<compile_context>
chip_gen: v6e
topology: v6e:2x2x1
jax: 0.10.0
libtpu: 0.0.40
codegen_flags: <defaults>
</compile_context>

<pallas_src>
import functools
import jax
import jax.numpy as jnp
from jax.experimental import pallas as pl
from jax.experimental.pallas import tpu as pltpu


def _attention_kernel(x_ref, wqkv_ref, wo_ref, bqkv_ref, lnp_ref, o_ref,
                      *, batch_tile, seq_len, eps):
    Bt, S = batch_tile, seq_len
    E = o_ref.shape[-1]

    # x arrives as bf16 (cast in the wrapper) -> half the DMA bytes vs f32.
    x = x_ref[...]

    # --- fused QKV projection: one (Bt*S, E) @ (E, 3E) MXU matmul -------------
    # Wq / bq inside the fused block already carry the 1/sqrt(E) attention scale.
    qkv = jnp.dot(x, wqkv_ref[...],
                  preferred_element_type=jnp.float32) + bqkv_ref[...]

    # Static lane slices (cheap intra-vreg / XLU work at small E; tile-aligned
    # and free once E >= 128).  S == 8 keeps the reshapes sublane-aligned.
    q = qkv[:, :E].reshape(Bt, S, E).astype(jnp.bfloat16)
    k = qkv[:, E:2 * E].reshape(Bt, S, E).astype(jnp.bfloat16)
    v = qkv[:, 2 * E:].reshape(Bt, S, E).astype(jnp.bfloat16)

    # --- per-batch scaled dot-product attention (num_heads = 1) ---------------
    # Batched contraction over E: no explicit K transpose.  Bt is static and
    # small, so the batched dot unrolls into interleaved per-batch MXU pushes.
    # TODO(synk): for S >~ 2k (sqrt(2) lower on v7x's 64 MiB VMEM) replace the
    # full (S,S) score tile with a query-tiled online-softmax (flash) loop.
    scores = jnp.einsum("bqe,bke->bqk", q, k,
                        preferred_element_type=jnp.float32)          # (Bt, S, S)

    m = jnp.max(scores, axis=-1, keepdims=True)
    p = jnp.exp(scores - m)                                          # unnormalized
    denom = jnp.sum(p, axis=-1, keepdims=True)

    ctx = jnp.einsum("bqk,bke->bqe", p.astype(jnp.bfloat16), v,
                     preferred_element_type=jnp.float32)             # (Bt, S, E)
    # Softmax normalization folded into ctx: one approx reciprocal per row (EUP).
    ctx = ctx * pl.reciprocal(denom, approx=True)

    # --- output projection + bias (bias is row 0 of the packed LN block) ------
    # TODO(synk): if rows is ever raised >= ~512 with large E, wrap the attention
    # core in a lax.fori_loop over batch chunks to bound vreg live ranges.
    out = jnp.dot(ctx.reshape(Bt * S, E).astype(jnp.bfloat16), wo_ref[...],
                  preferred_element_type=jnp.float32) + lnp_ref[0:1, :]

    # --- LayerNorm over last dim (f32 on the VPU) ------------------------------
    mean = jnp.mean(out, axis=-1, keepdims=True)
    diff = out - mean
    var = jnp.mean(diff * diff, axis=-1, keepdims=True)
    y = diff * jax.lax.rsqrt(var + eps) * lnp_ref[1:2, :] + lnp_ref[2:3, :]

    # TODO(synk): for E < 128 the store is lane-masked; a lane-dense (padded-E)
    # variant needs masked LayerNorm statistics and is only worth it at scale.
    o_ref[...] = y.astype(o_ref.dtype)


def _choose_batch_tile(B, S, E, *, target_rows=512,
                       vmem_budget_bytes=24 * 1024 * 1024):
    """Batch elements per grid step.

    Pick rows = bt*S large enough to fill the MXU M dim and amortize the
    ~0.35us per-grid-step overhead, bounded by a per-step VMEM estimate.
    We do NOT force >= 2 grid steps: v5e/v6e have a single TensorCore, so
    splitting tiny work only doubles fixed overhead; on v7x larger batches
    naturally yield multiple steps that the 'parallel' axis shards across TCs.
    """
    # Per step: x block (bf16, double-buffered) + out block (f32, double-buffered)
    # + ~8 f32 (rows, E)-sized intermediates (qkv/q/k/v/ctx/out/LN temps).
    bytes_per_row = 2 * E * 2 + 2 * E * 4 + 8 * E * 4
    max_rows = max(S, vmem_budget_bytes // max(bytes_per_row, 1))
    rows = min(B * S, target_rows, max_rows)
    bt = max(1, min(B, rows // max(S, 1)))
    while B % bt:
        bt -= 1
    return bt


def prepare_params(params):
    """One-time weight prep (hoisted out of the per-call path):
    fuse QKV, fold 1/sqrt(E) into Wq/bq, pack bo/gamma/beta, cast to MXU dtypes."""
    E = params["wq_t"].shape[0]
    scale = 1.0 / (E ** 0.5)   # num_heads = 1 -> head_dim = E
    wqkv_t = jnp.concatenate(
        [params["wq_t"] * scale, params["wk_t"], params["wv_t"]], axis=1)   # (E, 3E)
    bqkv = jnp.concatenate(
        [params["bq"] * scale, params["bk"], params["bv"]], axis=1)          # (1, 3E)
    ln_pack = jnp.concatenate(
        [params["bo"], params["gamma"], params["beta"]], axis=0)             # (3, E)
    # TODO(synk): for large E, quantize projection weights per-generation
    # (fp8 on v7x, int8 on v5e/v6e) to halve weight VMEM/HBM traffic.
    return dict(
        wqkv_t=wqkv_t.astype(jnp.bfloat16),
        wo_t=params["wo_t"].astype(jnp.bfloat16),
        bqkv=bqkv.astype(jnp.float32),
        ln_pack=ln_pack.astype(jnp.float32),
    )


def attention_forward(x, prepared, *, eps=1e-5, batch_tile=None):
    """x: (B, S, E) float32.  prepared: output of prepare_params()."""
    B, S, E = x.shape
    if batch_tile is None:
        batch_tile = _choose_batch_tile(B, S, E)
    assert B % batch_tile == 0
    num_steps = B // batch_tile
    rows = batch_tile * S

    # Tokens-major bf16 view: each grid step processes batch_tile*S rows.
    x2d = x.reshape(B * S, E).astype(jnp.bfloat16)

    kernel = functools.partial(_attention_kernel, batch_tile=batch_tile,
                               seq_len=S, eps=eps)

    def const_spec(shape):
        # Constant-index blocks never change index across the grid; the default
        # second buffer + re-DMA is pure waste, so single-buffer them whenever
        # the grid actually has multiple steps (with one step it is irrelevant).
        if num_steps > 1:
            return pl.BlockSpec(shape, lambda b: (0, 0),
                                pipeline_mode=pl.Buffered(1))
        return pl.BlockSpec(shape, lambda b: (0, 0))

    out2d = pl.pallas_call(
        kernel,
        out_shape=jax.ShapeDtypeStruct((B * S, E), jnp.float32),
        grid_spec=pltpu.PrefetchScalarGridSpec(
            num_scalar_prefetch=0,
            grid=(num_steps,),
            in_specs=[
                pl.BlockSpec((rows, E), lambda b: (b, 0)),   # x tokens (bf16)
                const_spec((E, 3 * E)),                      # fused [Wq*scale|Wk|Wv]^T (bf16)
                const_spec((E, E)),                          # Wo^T (bf16)
                const_spec((1, 3 * E)),                      # fused [bq*scale|bk|bv]
                const_spec((3, E)),                          # [bo; gamma; beta]
            ],
            out_specs=pl.BlockSpec((rows, E), lambda b: (b, 0)),
        ),
        compiler_params=pltpu.CompilerParams(
            dimension_semantics=("parallel",),               # batch tiles shard across TCs
            # Ceiling chosen to fit all generations (v7x physical VMEM = 64 MiB);
            # v5e/v6e could go higher but do not need it at these tile sizes.
            vmem_limit_bytes=48 * 1024 * 1024,
        ),
    )(x2d, prepared["wqkv_t"], prepared["wo_t"],
      prepared["bqkv"], prepared["ln_pack"])

    return out2d.reshape(B, S, E)


def reference_forward(x, params, *, eps=1e-5):
    """Pure-JAX f32 reference matching torch.nn.MultiheadAttention(num_heads=1) + LayerNorm."""
    E = x.shape[-1]
    scale = 1.0 / (E ** 0.5)
    q = x @ params["wq_t"] + params["bq"]
    k = x @ params["wk_t"] + params["bk"]
    v = x @ params["wv_t"] + params["bv"]
    scores = jnp.einsum("bqe,bke->bqk", q, k) * scale
    attn = jax.nn.softmax(scores, axis=-1)
    ctx = jnp.einsum("bqk,bke->bqe", attn, v)
    out = ctx @ params["wo_t"] + params["bo"]
    mean = jnp.mean(out, axis=-1, keepdims=True)
    var = jnp.mean((out - mean) ** 2, axis=-1, keepdims=True)
    return (out - mean) * jax.lax.rsqrt(var + eps) * params["gamma"] + params["beta"]


def init_params(key, E):
    """Deterministic synthetic init mirroring nn.MultiheadAttention / nn.LayerNorm shapes.

    PyTorch stores in_proj_weight (3E, E) and out_proj.weight (E, E); Linear computes
    y = x @ W^T + b, so here we store the already-transposed (E, E) matrices.
    """
    k = jax.random.split(key, 8)
    std = 0.05
    return dict(
        wq_t=std * jax.random.normal(k[0], (E, E), jnp.float32),
        wk_t=std * jax.random.normal(k[1], (E, E), jnp.float32),
        wv_t=std * jax.random.normal(k[2], (E, E), jnp.float32),
        wo_t=std * jax.random.normal(k[3], (E, E), jnp.float32),
        bq=std * jax.random.normal(k[4], (1, E), jnp.float32),
        bk=std * jax.random.normal(k[5], (1, E), jnp.float32),
        bv=std * jax.random.normal(k[6], (1, E), jnp.float32),
        bo=std * jax.random.normal(k[7], (1, E), jnp.float32),
        gamma=jnp.ones((1, E), jnp.float32),    # LayerNorm weight init = 1
        beta=jnp.zeros((1, E), jnp.float32),    # LayerNorm bias init = 0
    )


if __name__ == "__main__":
    B, S, E = 2, 8, 32   # batch=2, seq=8, input_size=32, num_heads=1
    key = jax.random.PRNGKey(0)
    kx, kp = jax.random.split(key)
    x = jax.random.normal(kx, (B, S, E), jnp.float32)
    params = init_params(kp, E)
    prepared = prepare_params(params)    # one-time weight fuse/scale/cast

    out = attention_forward(x, prepared)
    out = jax.block_until_ready(out)

    ref = reference_forward(x, params)
    assert out.shape == (B, S, E)
    # bf16 MXU inputs + approx reciprocal -> relaxed tolerance vs the f32 reference.
    assert jnp.allclose(out, ref, atol=5e-2, rtol=5e-2), "mismatch vs pure-JAX reference"

    print("KERNEL_OK")
</pallas_src>

<mosaic_0001>
module attributes {stable_mosaic.version = 11 : i64} {
  func.func @_attention_kernel(%arg0: i32, %arg1: memref<16x32xbf16, #tpu.memory_space<vmem>>, %arg2: memref<32x96xbf16, #tpu.memory_space<vmem>>, %arg3: memref<32x32xbf16, #tpu.memory_space<vmem>>, %arg4: memref<1x96xf32, #tpu.memory_space<vmem>>, %arg5: memref<3x32xf32, #tpu.memory_space<vmem>>, %arg6: memref<16x32xf32, #tpu.memory_space<vmem>>) attributes {dimension_semantics = [#tpu.dimension_semantics<parallel>], iteration_bounds = array<i64: 1>, scalar_prefetch = 0 : i64, scratch_operands = 0 : i64, tpu.core_type = #tpu.core_type<tc>, window_params = [{transform_indices = @transform_0, window_bounds = array<i64: 16, 32>}, {pipeline_mode = #tpu.pipeline_mode<synchronous>, transform_indices = @transform_1, window_bounds = array<i64: 32, 96>}, {pipeline_mode = #tpu.pipeline_mode<synchronous>, transform_indices = @transform_2, window_bounds = array<i64: 32, 32>}, {pipeline_mode = #tpu.pipeline_mode<synchronous>, transform_indices = @transform_3, window_bounds = array<i64: 1, 96>}, {pipeline_mode = #tpu.pipeline_mode<synchronous>, transform_indices = @transform_4, window_bounds = array<i64: 3, 32>}, {transform_indices = @transform_5, window_bounds = array<i64: 16, 32>}]} {
    %c0 = arith.constant 0 : index
    %c0_0 = arith.constant 0 : index
    %0 = vector.load %arg1[%c0, %c0_0] : memref<16x32xbf16, #tpu.memory_space<vmem>>, vector<16x32xbf16>
    %c0_1 = arith.constant 0 : index
    %c0_2 = arith.constant 0 : index
    %1 = vector.load %arg2[%c0_1, %c0_2] : memref<32x96xbf16, #tpu.memory_space<vmem>>, vector<32x96xbf16>
    %cst = arith.constant dense<0.000000e+00> : vector<16x96xf32>
    %2 = tpu.matmul %0, %1, %cst {dimension_numbers = #tpu.dot_dimension_numbers<[1], [0], [0], [1], [0, 0, 1, 1], [], []>} : vector<16x32xbf16>, vector<32x96xbf16>, vector<16x96xf32> -> vector<16x96xf32>
    %c0_3 = arith.constant 0 : index
    %c0_4 = arith.constant 0 : index
    %3 = vector.load %arg4[%c0_3, %c0_4] : memref<1x96xf32, #tpu.memory_space<vmem>>, vector<1x96xf32>
    %4 = vector.broadcast %3 : vector<1x96xf32> to vector<16x96xf32>
    %5 = arith.addf %2, %4 : vector<16x96xf32>
    %6 = vector.extract_strided_slice %5 {offsets = [0, 0], sizes = [16, 32], strides = [1, 1]} : vector<16x96xf32> to vector<16x32xf32>
    %7 = vector.shape_cast %6 : vector<16x32xf32> to vector<2x8x32xf32>
    %8 = arith.truncf %7 : vector<2x8x32xf32> to vector<2x8x32xbf16>
    %9 = vector.extract_strided_slice %5 {offsets = [0, 32], sizes = [16, 32], strides = [1, 1]} : vector<16x96xf32> to vector<16x32xf32>
    %10 = vector.shape_cast %9 : vector<16x32xf32> to vector<2x8x32xf32>
    %11 = arith.truncf %10 : vector<2x8x32xf32> to vector<2x8x32xbf16>
    %12 = vector.extract_strided_slice %5 {offsets = [0, 64], sizes = [16, 32], strides = [1, 1]} : vector<16x96xf32> to vector<16x32xf32>
    %13 = vector.shape_cast %12 : vector<16x32xf32> to vector<2x8x32xf32>
    %14 = arith.truncf %13 : vector<2x8x32xf32> to vector<2x8x32xbf16>
    "tpu.trace_start"() <{level = 10 : i32, message = "bqe,bke->bqk"}> : () -> ()
    %cst_5 = arith.constant dense<0.000000e+00> : vector<2x8x8xf32>
    %15 = tpu.matmul %8, %11, %cst_5 {dimension_numbers = #tpu.dot_dimension_numbers<[2], [2], [1], [1], [0, 0, 0, 1, 1, 1], [0], [0]>} : vector<2x8x32xbf16>, vector<2x8x32xbf16>, vector<2x8x8xf32> -> vector<2x8x8xf32>
    "tpu.trace_stop"() : () -> ()
    %cst_6 = arith.constant dense<0xFF800000> : vector<2x8xf32>
    %16 = vector.multi_reduction <maximumf>, %15, %cst_6 [2] : vector<2x8x8xf32> to vector<2x8xf32>
    %17 = vector.shape_cast %16 : vector<2x8xf32> to vector<2x8x1xf32>
    %18 = vector.broadcast %17 : vector<2x8x1xf32> to vector<2x8x8xf32>
    %19 = arith.subf %15, %18 : vector<2x8x8xf32>
    %20 = math.exp %19 : vector<2x8x8xf32>
    %cst_7 = arith.constant dense<0.000000e+00> : vector<2x8xf32>
    %21 = vector.multi_reduction <add>, %20, %cst_7 [2] : vector<2x8x8xf32> to vector<2x8xf32>
    %22 = vector.shape_cast %21 : vector<2x8xf32> to vector<2x8x1xf32>
    %23 = arith.truncf %20 : vector<2x8x8xf32> to vector<2x8x8xbf16>
    "tpu.trace_start"() <{level = 10 : i32, message = "bqk,bke->bqe"}> : () -> ()
    %cst_8 = arith.constant dense<0.000000e+00> : vector<2x8x32xf32>
    %24 = tpu.matmul %23, %14, %cst_8 {dimension_numbers = #tpu.dot_dimension_numbers<[2], [1], [1], [2], [0, 0, 0, 1, 1, 2], [0], [0]>} : vector<2x8x8xbf16>, vector<2x8x32xbf16>, vector<2x8x32xf32> -> vector<2x8x32xf32>
    "tpu.trace_stop"() : () -> ()
    %25 = tpu.reciprocal %22 {approx = true} : vector<2x8x1xf32> -> vector<2x8x1xf32>
    %26 = vector.broadcast %25 : vector<2x8x1xf32> to vector<2x8x32xf32>
    %27 = arith.mulf %24, %26 : vector<2x8x32xf32>
    %28 = vector.shape_cast %27 : vector<2x8x32xf32> to vector<16x32xf32>
    %29 = arith.truncf %28 : vector<16x32xf32> to vector<16x32xbf16>
    %c0_9 = arith.constant 0 : index
    %c0_10 = arith.constant 0 : index
    %30 = vector.load %arg3[%c0_9, %c0_10] : memref<32x32xbf16, #tpu.memory_space<vmem>>, vector<32x32xbf16>
    %cst_11 = arith.constant dense<0.000000e+00> : vector<16x32xf32>
    %31 = tpu.matmul %29, %30, %cst_11 {dimension_numbers = #tpu.dot_dimension_numbers<[1], [0], [0], [1], [0, 0, 1, 1], [], []>} : vector<16x32xbf16>, vector<32x32xbf16>, vector<16x32xf32> -> vector<16x32xf32>
    %c0_12 = arith.constant 0 : index
    %c0_13 = arith.constant 0 : index
    %32 = vector.load %arg5[%c0_12, %c0_13] : memref<3x32xf32, #tpu.memory_space<vmem>>, vector<1x32xf32>
    %33 = vector.broadcast %32 : vector<1x32xf32> to vector<16x32xf32>
    %34 = arith.addf %31, %33 : vector<16x32xf32>
    %cst_14 = arith.constant dense<0.000000e+00> : vector<16xf32>
    %35 = vector.multi_reduction <add>, %34, %cst_14 [1] : vector<16x32xf32> to vector<16xf32>
    %36 = vector.shape_cast %35 : vector<16xf32> to vector<16x1xf32>
    %cst_15 = arith.constant 3.200000e+01 : f32
    %37 = vector.broadcast %cst_15 : f32 to vector<16x1xf32>
    %38 = arith.divf %36, %37 : vector<16x1xf32>
    %39 = vector.broadcast %38 : vector<16x1xf32> to vector<16x32xf32>
    %40 = arith.subf %34, %39 : vector<16x32xf32>
    %41 = arith.mulf %40, %40 : vector<16x32xf32>
    %cst_16 = arith.constant dense<0.000000e+00> : vector<16xf32>
    %42 = vector.multi_reduction <add>, %41, %cst_16 [1] : vector<16x32xf32> to vector<16xf32>
    %43 = vector.shape_cast %42 : vector<16xf32> to vector<16x1xf32>
    %cst_17 = arith.constant 3.200000e+01 : f32
    %44 = vector.broadcast %cst_17 : f32 to vector<16x1xf32>
    %45 = arith.divf %43, %44 : vector<16x1xf32>
    %cst_18 = arith.constant 9.99999974E-6 : f32
    %46 = vector.broadcast %cst_18 : f32 to vector<16x1xf32>
    %47 = arith.addf %45, %46 : vector<16x1xf32>
    %48 = math.rsqrt %47 : vector<16x1xf32>
    %49 = vector.broadcast %48 : vector<16x1xf32> to vector<16x32xf32>
    %50 = arith.mulf %40, %49 : vector<16x32xf32>
    %c1 = arith.constant 1 : index
    %c0_19 = arith.constant 0 : index
    %51 = vector.load %arg5[%c1, %c0_19] : memref<3x32xf32, #tpu.memory_space<vmem>>, vector<1x32xf32>
    %52 = vector.broadcast %51 : vector<1x32xf32> to vector<16x32xf32>
    %53 = arith.mulf %50, %52 : vector<16x32xf32>
    %c2 = arith.constant 2 : index
    %c0_20 = arith.constant 0 : index
    %54 = vector.load %arg5[%c2, %c0_20] : memref<3x32xf32, #tpu.memory_space<vmem>>, vector<1x32xf32>
    %55 = vector.broadcast %54 : vector<1x32xf32> to vector<16x32xf32>
    %56 = arith.addf %53, %55 : vector<16x32xf32>
    %c0_21 = arith.constant 0 : index
    %c0_22 = arith.constant 0 : index
    %57 = vector.load %arg6[%c0_21, %c0_22] : memref<16x32xf32, #tpu.memory_space<vmem>>, vector<16x32xf32>
    tpu.vector_store %arg6[%c0_21, %c0_22], %56 {strides = array<i32>} : memref<16x32xf32, #tpu.memory_space<vmem>>, vector<16x32xf32>,
    return
  }
  func.func @transform_0(%arg0: i32) -> (i32, i32) {
    %c0_i32 = arith.constant 0 : i32
    %c0_i32_0 = arith.constant 0 : i32
    return %arg0, %c0_i32 : i32, i32
  }
  func.func @transform_1(%arg0: i32) -> (i32, i32) {
    %c0_i32 = arith.constant 0 : i32
    %c0_i32_0 = arith.constant 0 : i32
    %c0_i32_1 = arith.constant 0 : i32
    return %c0_i32, %c0_i32_0 : i32, i32
  }
  func.func @transform_2(%arg0: i32) -> (i32, i32) {
    %c0_i32 = arith.constant 0 : i32
    %c0_i32_0 = arith.constant 0 : i32
    %c0_i32_1 = arith.constant 0 : i32
    return %c0_i32, %c0_i32_0 : i32, i32
  }
  func.func @transform_3(%arg0: i32) -> (i32, i32) {
    %c0_i32 = arith.constant 0 : i32
    %c0_i32_0 = arith.constant 0 : i32
    %c0_i32_1 = arith.constant 0 : i32
    return %c0_i32, %c0_i32_0 : i32, i32
  }
  func.func @transform_4(%arg0: i32) -> (i32, i32) {
    %c0_i32 = arith.constant 0 : i32
    %c0_i32_0 = arith.constant 0 : i32
    %c0_i32_1 = arith.constant 0 : i32
    return %c0_i32, %c0_i32_0 : i32, i32
  }
  func.func @transform_5(%arg0: i32) -> (i32, i32) {
    %c0_i32 = arith.constant 0 : i32
    %c0_i32_0 = arith.constant 0 : i32
    return %arg0, %c0_i32 : i32, i32
  }
}

</mosaic_0001>

<llo_original>
// kernel: tpu_custom_call.1
$region0: #{tpu_custom_call.1}
  #allocation0 [shape = 'u32[]', space=smem, size = 0x4, offset = 0x4, fixed_abs, tag = 'smem constant byte address 0x4 - core index']
  #allocation1 [shape = 'u32[144,128]{1,0:T(1,128)}', space=vmem, size = 0x12000, scoped, tag = 'internal scratch']
  %s0 = inlined_call_operand.hbm [shape: bf16[16,32], index: 0, kind: input, shape index: {}]
  %s1 = inlined_call_operand.hbm [shape: bf16[32,96], index: 1, kind: input, shape index: {}]
  %s2 = inlined_call_operand.hbm [shape: bf16[32,32], index: 2, kind: input, shape index: {}]
  %s3 = inlined_call_operand.vmem [shape: f32[1,96], index: 3, kind: input, shape index: {}]
  %s4 = inlined_call_operand.vmem [shape: f32[3,32], index: 4, kind: input, shape index: {}]
  %s5 = inlined_call_operand.hbm [shape: f32[16,32], index: 5, kind: output, shape index: {}]
  %s6 = sld [smem:[#allocation0]]
  $region42: #{tpu_custom_call.1} parent=0
    _
  %s8 = ssub.s32 1, %s6
  %s9 = scalar_select 0, %s8, %s6
  $region1: #{tpu_custom_call.1} parent=0
    #allocation2 [shape = 'u8[4096]{0}', space=vmem, size = 0x1000, scoped, tag = 'input window, operand 0, single buffered']
    #allocation3 [shape = 's32[1]{0}', space=sflag, size = 0x4, scoped, tag = 'scoped memory for tpu_custom_call.1']
    #allocation4 [shape = 's32[1]{0}', space=sflag, size = 0x4, scoped, tag = 'scoped memory for tpu_custom_call.1']
    #allocation5 [shape = 'u8[8192]{0}', space=vmem, size = 0x2000, scoped, tag = 'input window, operand 1, single buffered']
    #allocation6 [shape = 's32[1]{0}', space=sflag, size = 0x4, scoped, tag = 'scoped memory for tpu_custom_call.1']
    #allocation7 [shape = 'u8[8192]{0}', space=vmem, size = 0x2000, scoped, tag = 'input window, operand 2, single buffered']
    #allocation8 [shape = 'u8[8192]{0}', space=vmem, size = 0x2000, scoped, tag = 'output window, operand 0, single buffered']
    %10 = vsyncpa [#allocation3], 0
    %11 = vsyncpa [#allocation6], 0
    %12 = vsyncpa [#allocation4], 0
    // Predicated region
    $region2: #{tpu_custom_call.1} parent=1 // pred_check
      _
    $region3: #{tpu_custom_call.1} parent=1 // pred_check_branch
      %14 = sbr.rel (0) target = $region5
    $region4: #{tpu_custom_call.1} parent=1 // pred_region
      %s16 = ssub.s32 128, 128
      %17 = vsyncadd [#allocation3], %s16
      %s18 = sshll.u32 [#allocation2], 4
      %s19 = int_to_ptr.vmem [resolvable:$true] %s18
      %24 = dma.hbm_to_vmem [thread:$0]  %s0, 128, %s19, [#allocation3], 64, 64, 4
    $region5: #{tpu_custom_call.1} parent=1 // pred_fallthru
      _
    // Predicated region
    $region6: #{tpu_custom_call.1} parent=1 // pred_check
      _
    $region7: #{tpu_custom_call.1} parent=1 // pred_check_branch
      %26 = sbr.rel (0) target = $region9
    $region8: #{tpu_custom_call.1} parent=1 // pred_region
      %s28 = ssub.s32 256, 256
      %29 = vsyncadd [#allocation6], %s28
      %s30 = sshll.u32 [#allocation5], 4
      %s31 = int_to_ptr.vmem [resolvable:$true] %s30
      %36 = dma.hbm_to_vmem [thread:$0]  %s1, 256, %s31, [#allocation6], 64, 64, 4
    $region9: #{tpu_custom_call.1} parent=1 // pred_fallthru
      _
    // Predicated region
    $region10: #{tpu_custom_call.1} parent=1 // pred_check
      _
    $region11: #{tpu_custom_call.1} parent=1 // pred_check_branch
      %38 = sbr.rel (0) target = $region13
    $region12: #{tpu_custom_call.1} parent=1 // pred_region
      %s40 = ssub.s32 256, 256
      %41 = vsyncadd [#allocation6], %s40
      %s42 = sshll.u32 [#allocation7], 4
      %s43 = int_to_ptr.vmem [resolvable:$true] %s42
      %48 = dma.hbm_to_vmem [thread:$0]  %s2, 256, %s43, [#allocation6], 64, 64, 4
    $region13: #{tpu_custom_call.1} parent=1 // pred_fallthru
      _
    // Predicated region
    $region14: #{tpu_custom_call.1} parent=1 // pred_check
      _
    $region15: #{tpu_custom_call.1} parent=1 // pred_check_branch
      %50 = sbr.rel (0) target = $region17
    $region16: #{tpu_custom_call.1} parent=1 // pred_region
      _
    $region17: #{tpu_custom_call.1} parent=1 // pred_fallthru
      _
    // Predicated region
    $region18: #{tpu_custom_call.1} parent=1 // pred_check
      _
    $region19: #{tpu_custom_call.1} parent=1 // pred_check_branch
      %52 = sbr.rel (0) target = $region21
    $region20: #{tpu_custom_call.1} parent=1 // pred_region
      _
    $region21: #{tpu_custom_call.1} parent=1 // pred_fallthru
      _
    // Predicated region
    $region22: #{tpu_custom_call.1} parent=1 // pred_check
      _
    $region23: #{tpu_custom_call.1} parent=1 // pred_check_branch
      %54 = sbr.rel (0) target = $region25
    $region24: #{tpu_custom_call.1} parent=1 // pred_region
      %55 = dma.done [#allocation3], 128
    $region25: #{tpu_custom_call.1} parent=1 // pred_fallthru
      _
    // Predicated region
    $region26: #{tpu_custom_call.1} parent=1 // pred_check
      _
    $region27: #{tpu_custom_call.1} parent=1 // pred_check_branch
      %57 = sbr.rel (0) target = $region29
    $region28: #{tpu_custom_call.1} parent=1 // pred_region
      %58 = dma.done [#allocation6], 256
    $region29: #{tpu_custom_call.1} parent=1 // pred_fallthru
      _
    // Predicated region
    $region30: #{tpu_custom_call.1} parent=1 // pred_check
      _
    $region31: #{tpu_custom_call.1} parent=1 // pred_check_branch
      %60 = sbr.rel (0) target = $region33
    $region32: #{tpu_custom_call.1} parent=1 // pred_region
      %61 = dma.done [#allocation6], 256
    $region33: #{tpu_custom_call.1} parent=1 // pred_fallthru
      _
    %v63 = vld [vmem:[#allocation2] sm:$0xf]
    %v64 = vld [vmem:[#allocation2 + $0x4] sm:$0xf]
    %v65 = vld [vmem:[#allocation5] sm:$0xf]
    %v66 = vld [vmem:[#allocation5 + $0x4] sm:$0xf]
    %v67 = vld [vmem:[#allocation5 + $0x8] sm:$0xf]
    %v68 = vld [vmem:[#allocation5 + $0xc] sm:$0xf]
    %v69 = vld [vmem:[%s3] sm:$0x1]
    %v71 = vlaneseq
    %v72 = vshrl.u32 %v71, 7
    %v73 = vsub.s32 0, %v72
    %v74 = vrot.slane %v69, %v73
    %v78 = vunpack.c.l.b16 %v63
    %v79 = vunpack.c.l.b16 %v64
    %v80 = vpack.c.b16 %v79, %v78
    %v85 = vunpack.c.l.b16 %v65
    %v86 = vunpack.c.l.b16 %v66
    %v87 = vunpack.c.l.b16 %v67
    %v88 = vunpack.c.l.b16 %v68
    %v89 = vpack.c.b16 %v86, %v85
    %v90 = vpack.c.b16 %v88, %v87
    %vm93 = vcmask 261120
    %v95 = vsel %vm93, %v80, 0
    %97 = vmatprep.subr.bf16.mxu0 0
    %98 = vmatpush1.bf16.msra.mxu0 0
    %99 = vmatprep.subr.bf16.mxu0 0
    %100 = vmatpush1.bf16.msra.mxu0 0
    %101 = vmatprep.subr.bf16.mxu0 0
    %102 = vmatpush1.bf16.msra.mxu0 0
    %103 = vmatprep.subr.bf16.mxu0 0
    %104 = vmatpush1.bf16.msra.mxu0 0
    %105 = vmatprep.subr.bf16.mxu0 0
    %106 = vmatpush1.bf16.msra.mxu0 0
    %107 = vmatprep.subr.bf16.mxu0 0
    %108 = vmatpush1.bf16.msra.mxu0 0
    %109 = vmatprep.subr.bf16.mxu0 0
    %110 = vmatpush1.bf16.msra.mxu0 %v90
    %111 = vmatprep.subr.bf16.mxu0 0
    %112 = vmatpush1.bf16.msra.mxu0 %v89
    %113 = vmatprep.subr.bf16.mxu0 0
    %114 = vmatpush2.bf16.msra.mxu0 0
    %115 = vmatprep.subr.bf16.mxu0 0
    %116 = vmatpush2.bf16.msra.mxu0 0
    %117 = vmatprep.subr.bf16.mxu0 0
    %118 = vmatpush2.bf16.msra.mxu0 0
    %119 = vmatprep.subr.bf16.mxu0 0
    %120 = vmatpush2.bf16.msra.mxu0 0
    %121 = vmatprep.subr.bf16.mxu0 0
    %122 = vmatpush2.bf16.msra.mxu0 0
    %123 = vmatprep.subr.bf16.mxu0 0
    %124 = vmatpush2.bf16.msra.mxu0 0
    %125 = vmatprep.subr.bf16.mxu0 0
    %126 = vmatpush2.bf16.msra.mxu0 0
    %127 = vmatprep.subr.bf16.mxu0 0
    %128 = vmatpush2.bf16.msra.mxu0 0
    %129 = vmatprep.mubr.bf16.mxu0 0
    %130 = vmatmul.mubr.bf16.gmra.mxu0 %v95
    %v131 = vpop.f32.mrf.mxu0
    %v132 = vadd.f32 %v74, %v131
    %v133 = vpop.f32.mrf.mxu0
    %v134 = vpop.f32.mrf.mxu0
    %v135 = vadd.f32 %v74, %v134
    %v136 = vpop.f32.mrf.mxu0
    %137 = vdwg.mxu0
    %v138 = vpack.c.bf16 %v132, %v132
    %v139 = vpack.c.bf16 %v135, %v135
    %141 = vrot.lane.b32.xlu0 %v138, 96
    %v142 = vpop.permute.xlu0 %141
    %v144 = vsel %vm93, %v138, 0
    %v147 = vsel %vm93, %v142, 0
    %149 = vmatprep.subr.bf16.mxu0 0
    %150 = vmatpush1.bf16.xpose.msra.mxu0 0
    %151 = vmatprep.subr.bf16.mxu0 0
    %152 = vmatpush1.bf16.xpose.msra.mxu0 0
    %153 = vmatprep.subr.bf16.mxu0 0
    %154 = vmatpush1.bf16.xpose.msra.mxu0 0
    %155 = vmatprep.subr.bf16.mxu0 0
    %156 = vmatpush1.bf16.xpose.msra.mxu0 0
    %157 = vmatprep.subr.bf16.mxu0 0
    %158 = vmatpush1.bf16.xpose.msra.mxu0 0
    %159 = vmatprep.subr.bf16.mxu0 0
    %160 = vmatpush1.bf16.xpose.msra.mxu0 0
    %161 = vmatprep.subr.bf16.mxu0 0
    %162 = vmatpush1.bf16.xpose.msra.mxu0 0
    %163 = vmatprep.subr.bf16.mxu0 0
    %164 = vmatpush1.bf16.xpose.msra.mxu0 %v147
    %165 = vmatprep.subr.bf16.mxu0 0
    %166 = vmatpush2.bf16.xpose.msra.mxu0 0
    %167 = vmatprep.subr.bf16.mxu0 0
    %168 = vmatpush2.bf16.xpose.msra.mxu0 0
    %169 = vmatprep.subr.bf16.mxu0 0
    %170 = vmatpush2.bf16.xpose.msra.mxu0 0
    %171 = vmatprep.subr.bf16.mxu0 0
    %172 = vmatpush2.bf16.xpose.msra.mxu0 0
    %173 = vmatprep.subr.bf16.mxu0 0
    %174 = vmatpush2.bf16.xpose.msra.mxu0 0
    %175 = vmatprep.subr.bf16.mxu0 0
    %176 = vmatpush2.bf16.xpose.msra.mxu0 0
    %177 = vmatprep.subr.bf16.mxu0 0
    %178 = vmatpush2.bf16.xpose.msra.mxu0 0
    %179 = vmatprep.subr.bf16.mxu0 0
    %180 = vmatpush2.bf16.xpose.msra.mxu0 0
    %181 = vmatprep.mubr.bf16.mxu0 0
    %182 = vmatmul.mubr.bf16.gmra.mxu0 %v144
    %v183 = vpop.f32.mrf.mxu0
    %v184 = vadd.f32 0.0, %v183
    %v185 = vpop.f32.mrf.mxu0
    %v186 = vpop.f32.mrf.mxu0
    %v187 = vpop.f32.mrf.mxu0
    %188 = vdwg.mxu0
    %190 = vrot.lane.b32.xlu0 %v139, 96
    %v191 = vpop.permute.xlu0 %190
    %v193 = vsel %vm93, %v139, 0
    %v196 = vsel %vm93, %v191, 0
    %198 = vmatprep.subr.bf16.mxu0 0
    %199 = vmatpush1.bf16.xpose.msra.mxu0 0
    %200 = vmatprep.subr.bf16.mxu0 0
    %201 = vmatpush1.bf16.xpose.msra.mxu0 0
    %202 = vmatprep.subr.bf16.mxu0 0
    %203 = vmatpush1.bf16.xpose.msra.mxu0 0
    %204 = vmatprep.subr.bf16.mxu0 0
    %205 = vmatpush1.bf16.xpose.msra.mxu0 0
    %206 = vmatprep.subr.bf16.mxu0 0
    %207 = vmatpush1.bf16.xpose.msra.mxu0 0
    %208 = vmatprep.subr.bf16.mxu0 0
    %209 = vmatpush1.bf16.xpose.msra.mxu0 0
    %210 = vmatprep.subr.bf16.mxu0 0
    %211 = vmatpush1.bf16.xpose.msra.mxu0 0
    %212 = vmatprep.subr.bf16.mxu0 0
    %213 = vmatpush1.bf16.xpose.msra.mxu0 %v196
    %214 = vmatprep.subr.bf16.mxu0 0
    %215 = vmatpush2.bf16.xpose.msra.mxu0 0
    %216 = vmatprep.subr.bf16.mxu0 0
    %217 = vmatpush2.bf16.xpose.msra.mxu0 0
    %218 = vmatprep.subr.bf16.mxu0 0
    %219 = vmatpush2.bf16.xpose.msra.mxu0 0
    %220 = vmatprep.subr.bf16.mxu0 0
    %221 = vmatpush2.bf16.xpose.msra.mxu0 0
    %222 = vmatprep.subr.bf16.mxu0 0
    %223 = vmatpush2.bf16.xpose.msra.mxu0 0
    %224 = vmatprep.subr.bf16.mxu0 0
    %225 = vmatpush2.bf16.xpose.msra.mxu0 0
    %226 = vmatprep.subr.bf16.mxu0 0
    %227 = vmatpush2.bf16.xpose.msra.mxu0 0
    %228 = vmatprep.subr.bf16.mxu0 0
    %229 = vmatpush2.bf16.xpose.msra.mxu0 0
    %230 = vmatprep.mubr.bf16.mxu0 0
    %231 = vmatmul.mubr.bf16.gmra.mxu0 %v193
    %v232 = vpop.f32.mrf.mxu0
    %v233 = vadd.f32 0.0, %v232
    %v234 = vpop.f32.mrf.mxu0
    %v235 = vpop.f32.mrf.mxu0
    %v236 = vpop.f32.mrf.mxu0
    %237 = vdwg.mxu0
    %vm238 = vcmask 64512
    %v239 = vsel %vm238, %v184, -inf
    %240 = vmax.xlane.f32.xlu0 %v239
    %v241 = vpop.xlane.xlu0 %240
    %v242 = vsel %vm238, %v233, -inf
    %243 = vmax.xlane.f32.xlu0 %v242
    %v244 = vpop.xlane.xlu0 %243
    %v245 = vsub.f32 %v184, %v241
    %v246 = vsub.f32 %v233, %v244
    %v247 = vmul.f32 %v245, 1.442695
    %v248 = vpow.pop %v247
    %v249 = vmul.f32 %v246, 1.442695
    %v250 = vpow.pop %v249
    %v251 = vsel %vm238, %v248, 0.0
    %252 = vadd.xlane.f32.xlu0 %v251
    %v253 = vpop.xlane.xlu0 %252
    %v254 = vsel %vm238, %v250, 0.0
    %255 = vadd.xlane.f32.xlu0 %v254
    %v256 = vpop.xlane.xlu0 %255
    %v257 = vpack.c.bf16 %v248, %v248
    %v258 = vpack.c.bf16 %v250, %v250
    %259 = vrot.lane.b32.xlu0 %v138, 64
    %v260 = vpop.permute.xlu0 %259
    %v262 = vsel %vm238, %v257, 0
    %vm264 = vcmask 1043456
    %v266 = vsel %vm264, %v260, 0
    %268 = vmatprep.subr.bf16.mxu0 0
    %269 = vmatpush1.bf16.msra.mxu0 0
    %270 = vmatprep.subr.bf16.mxu0 0
    %271 = vmatpush1.bf16.msra.mxu0 0
    %272 = vmatprep.subr.bf16.mxu0 0
    %273 = vmatpush1.bf16.msra.mxu0 0
    %274 = vmatprep.subr.bf16.mxu0 0
    %275 = vmatpush1.bf16.msra.mxu0 0
    %276 = vmatprep.subr.bf16.mxu0 0
    %277 = vmatpush1.bf16.msra.mxu0 0
    %278 = vmatprep.subr.bf16.mxu0 0
    %279 = vmatpush1.bf16.msra.mxu0 0
    %280 = vmatprep.subr.bf16.mxu0 0
    %281 = vmatpush1.bf16.msra.mxu0 0
    %282 = vmatprep.subr.bf16.mxu0 0
    %283 = vmatpush1.bf16.msra.mxu0 %v266
    %284 = vmatprep.subr.bf16.mxu0 0
    %285 = vmatpush2.bf16.msra.mxu0 0
    %286 = vmatprep.subr.bf16.mxu0 0
    %287 = vmatpush2.bf16.msra.mxu0 0
    %288 = vmatprep.subr.bf16.mxu0 0
    %289 = vmatpush2.bf16.msra.mxu0 0
    %290 = vmatprep.subr.bf16.mxu0 0
    %291 = vmatpush2.bf16.msra.mxu0 0
    %292 = vmatprep.subr.bf16.mxu0 0
    %293 = vmatpush2.bf16.msra.mxu0 0
    %294 = vmatprep.subr.bf16.mxu0 0
    %295 = vmatpush2.bf16.msra.mxu0 0
    %296 = vmatprep.subr.bf16.mxu0 0
    %297 = vmatpush2.bf16.msra.mxu0 0
    %298 = vmatprep.subr.bf16.mxu0 0
    %299 = vmatpush2.bf16.msra.mxu0 0
    %300 = vmatprep.mubr.bf16.mxu0 0
    %301 = vmatmul.mubr.bf16.gmra.mxu0 %v262
    %v302 = vpop.f32.mrf.mxu0
    %v303 = vadd.f32 0.0, %v302
    %v304 = vpop.f32.mrf.mxu0
    %v305 = vpop.f32.mrf.mxu0
    %v306 = vpop.f32.mrf.mxu0
    %307 = vdwg.mxu0
    %308 = vrot.lane.b32.xlu0 %v139, 64
    %v309 = vpop.permute.xlu0 %308
    %v311 = vsel %vm238, %v258, 0
    %v314 = vsel %vm264, %v309, 0
    %316 = vmatprep.subr.bf16.mxu0 0
    %317 = vmatpush1.bf16.msra.mxu0 0
    %318 = vmatprep.subr.bf16.mxu0 0
    %319 = vmatpush1.bf16.msra.mxu0 0
    %320 = vmatprep.subr.bf16.mxu0 0
    %321 = vmatpush1.bf16.msra.mxu0 0
    %322 = vmatprep.subr.bf16.mxu0 0
    %323 = vmatpush1.bf16.msra.mxu0 0
    %324 = vmatprep.subr.bf16.mxu0 0
    %325 = vmatpush1.bf16.msra.mxu0 0
    %326 = vmatprep.subr.bf16.mxu0 0
    %327 = vmatpush1.bf16.msra.mxu0 0
    %328 = vmatprep.subr.bf16.mxu0 0
    %329 = vmatpush1.bf16.msra.mxu0 0
    %330 = vmatprep.subr.bf16.mxu0 0
    %331 = vmatpush1.bf16.msra.mxu0 %v314
    %332 = vmatprep.subr.bf16.mxu0 0
    %333 = vmatpush2.bf16.msra.mxu0 0
    %334 = vmatprep.subr.bf16.mxu0 0
    %335 = vmatpush2.bf16.msra.mxu0 0
    %336 = vmatprep.subr.bf16.mxu0 0
    %337 = vmatpush2.bf16.msra.mxu0 0
    %338 = vmatprep.subr.bf16.mxu0 0
    %339 = vmatpush2.bf16.msra.mxu0 0
    %340 = vmatprep.subr.bf16.mxu0 0
    %341 = vmatpush2.bf16.msra.mxu0 0
    %342 = vmatprep.subr.bf16.mxu0 0
    %343 = vmatpush2.bf16.msra.mxu0 0
    %344 = vmatprep.subr.bf16.mxu0 0
    %345 = vmatpush2.bf16.msra.mxu0 0
    %346 = vmatprep.subr.bf16.mxu0 0
    %347 = vmatpush2.bf16.msra.mxu0 0
    %348 = vmatprep.mubr.bf16.mxu0 0
    %349 = vmatmul.mubr.bf16.gmra.mxu0 %v311
    %v350 = vpop.f32.mrf.mxu0
    %v351 = vadd.f32 0.0, %v350
    %v352 = vpop.f32.mrf.mxu0
    %v353 = vpop.f32.mrf.mxu0
    %v354 = vpop.f32.mrf.mxu0
    %355 = vdwg.mxu0
    %v356 = vrcp.pop %v253
    %v357 = vrcp.pop %v256
    %v358 = vmul.f32 %v303, %v356
    %v359 = vmul.f32 %v351, %v357
    %v360 = vpack.c.bf16 %v359, %v358
    %v361 = vld [vmem:[#allocation7] sm:$0xf]
    %v362 = vld [vmem:[#allocation7 + $0x4] sm:$0xf]
    %v363 = vld [vmem:[#allocation7 + $0x8] sm:$0xf]
    %v364 = vld [vmem:[#allocation7 + $0xc] sm:$0xf]
    %v365 = vld [vmem:[%s4] sm:$0x1]
    %v366 = vlaneseq
    %v367 = vshrl.u32 %v366, 7
    %v368 = vsub.s32 0, %v367
    %v369 = vrot.slane %v365, %v368
    %v374 = vunpack.c.l.b16 %v361
    %v375 = vunpack.c.l.b16 %v362
    %v376 = vunpack.c.l.b16 %v363
    %v377 = vunpack.c.l.b16 %v364
    %v378 = vpack.c.b16 %v375, %v374
    %v379 = vpack.c.b16 %v377, %v376
    %v383 = vsel %vm93, %v360, 0
    %385 = vmatprep.subr.bf16.mxu0 0
    %386 = vmatpush1.bf16.msra.mxu0 0
    %387 = vmatprep.subr.bf16.mxu0 0
    %388 = vmatpush1.bf16.msra.mxu0 0
    %389 = vmatprep.subr.bf16.mxu0 0
    %390 = vmatpush1.bf16.msra.mxu0 0
    %391 = vmatprep.subr.bf16.mxu0 0
    %392 = vmatpush1.bf16.msra.mxu0 0
    %393 = vmatprep.subr.bf16.mxu0 0
    %394 = vmatpush1.bf16.msra.mxu0 0
    %395 = vmatprep.subr.bf16.mxu0 0
    %396 = vmatpush1.bf16.msra.mxu0 0
    %397 = vmatprep.subr.bf16.mxu0 0
    %398 = vmatpush1.bf16.msra.mxu0 %v379
    %399 = vmatprep.subr.bf16.mxu0 0
    %400 = vmatpush1.bf16.msra.mxu0 %v378
    %401 = vmatprep.subr.bf16.mxu0 0
    %402 = vmatpush2.bf16.msra.mxu0 0
    %403 = vmatprep.subr.bf16.mxu0 0
    %404 = vmatpush2.bf16.msra.mxu0 0
    %405 = vmatprep.subr.bf16.mxu0 0
    %406 = vmatpush2.bf16.msra.mxu0 0
    %407 = vmatprep.subr.bf16.mxu0 0
    %408 = vmatpush2.bf16.msra.mxu0 0
    %409 = vmatprep.subr.bf16.mxu0 0
    %410 = vmatpush2.bf16.msra.mxu0 0
    %411 = vmatprep.subr.bf16.mxu0 0
    %412 = vmatpush2.bf16.msra.mxu0 0
    %413 = vmatprep.subr.bf16.mxu0 0
    %414 = vmatpush2.bf16.msra.mxu0 0
    %415 = vmatprep.subr.bf16.mxu0 0
    %416 = vmatpush2.bf16.msra.mxu0 0
    %417 = vmatprep.mubr.bf16.mxu0 0
    %418 = vmatmul.mubr.bf16.gmra.mxu0 %v383
    %v419 = vpop.f32.mrf.mxu0
    %v420 = vadd.f32 %v369, %v419
    %v421 = vpop.f32.mrf.mxu0
    %v422 = vpop.f32.mrf.mxu0
    %v423 = vadd.f32 %v369, %v422
    %v424 = vpop.f32.mrf.mxu0
    %425 = vdwg.mxu0
    %v426 = vsel %vm93, %v420, 0.0
    %427 = vadd.xlane.f32.xlu0 %v426
    %v428 = vpop.xlane.xlu0 %427
    %v429 = vsel %vm93, %v423, 0.0
    %430 = vadd.xlane.f32.xlu0 %v429
    %v431 = vpop.xlane.xlu0 %430
    %v432 = vrcp.pop 32.0
    %v433 = vmul.f32 %v428, %v432
    %v434 = vmul.f32 %v431, %v432
    %v435 = vsub.f32 %v420, %v433
    %v436 = vsub.f32 %v423, %v434
    %v437 = vmul.f32 %v435, %v435
    %v438 = vmul.f32 %v436, %v436
    %v439 = vsel %vm93, %v437, 0.0
    %440 = vadd.xlane.f32.xlu0 %v439
    %v441 = vpop.xlane.xlu0 %440
    %v442 = vsel %vm93, %v438, 0.0
    %443 = vadd.xlane.f32.xlu0 %v442
    %v444 = vpop.xlane.xlu0 %443
    %v445 = vmul.f32 %v441, %v432
    %v446 = vmul.f32 %v444, %v432
    %v447 = vadd.f32 %v445, 1e-05
    %v448 = vadd.f32 %v446, 1e-05
    %v449 = vrsqrt.pop %v447
    %v450 = vrsqrt.pop %v448
    %v451 = vmul.f32 %v435, %v449
    %v452 = vmul.f32 %v436, %v450
    %v453 = vld [vmem:[%s4 + $0x1] sm:$0x1]
    %v454 = vlaneseq
    %v455 = vshrl.u32 %v454, 7
    %v456 = vsub.s32 0, %v455
    %v457 = vrot.slane %v453, %v456
    %v458 = vmul.f32 %v451, %v457
    %v459 = vmul.f32 %v452, %v457
    %v460 = vld [vmem:[%s4 + $0x2] sm:$0x1]
    %v461 = vlaneseq
    %v462 = vshrl.u32 %v461, 7
    %v463 = vsub.s32 0, %v462
    %v464 = vrot.slane %v460, %v463
    %v465 = vadd.f32 %v458, %v464
    %v466 = vadd.f32 %v459, %v464
    %467 = vst.msk [vmem:[#allocation8] sm:$0xff] %vm93, %v465
    %468 = vst.msk [vmem:[#allocation8 + $0x8] sm:$0xff] %vm93, %v466
    // Predicated region
    $region34: #{tpu_custom_call.1} parent=1 // pred_check
      _
    $region35: #{tpu_custom_call.1} parent=1 // pred_check_branch
      %470 = sbr.rel (0) target = $region37
    $region36: #{tpu_custom_call.1} parent=1 // pred_region
      %s472 = ssub.s32 256, 256
      %473 = vsyncadd [#allocation4], %s472
      %s474 = sshll.u32 [#allocation8], 4
      %s475 = int_to_ptr.vmem [resolvable:$true] %s474
      %480 = dma.vmem_to_hbm [thread:$0]  %s475, 256, %s5, [#allocation4], 128, 128, 8
    $region37: #{tpu_custom_call.1} parent=1 // pred_fallthru
      _
    // Predicated region
    $region38: #{tpu_custom_call.1} parent=1 // pred_check
      _
    $region39: #{tpu_custom_call.1} parent=1 // pred_check_branch
      %482 = sbr.rel (0) target = $region41
    $region40: #{tpu_custom_call.1} parent=1 // pred_region
      %483 = dma.done [#allocation4], 256
    $region41: #{tpu_custom_call.1} parent=1 // pred_fallthru
      _
    %484 = vsyncpa [#allocation3], 1
    %485 = vsyncpa [#allocation6], 1
    %486 = vsyncpa [#allocation4], 1

</llo_original>
